<compile_context>
chip_gen: v7x
topology: tpu7x:2x2x1
jax: 0.10.0
libtpu: 0.0.40
codegen_flags: <defaults>
</compile_context>

<pallas_src>
import functools

import jax
import jax.numpy as jnp
from jax.experimental import pallas as pl
from jax.experimental.pallas import tpu as pltpu


def _glu_conv_kernel(x_ref, w_ref, b_ref, o_ref, xp_ref, acc_ref, *,
                     pad, seq_len, num_l_tiles):
    """One (batch, L-tile) grid step.

    x_ref  : (1, C_in, L)           raw batch row (input dtype), revisited across j
    w_ref  : (K, 2*C_out, C_in)     fused [conv1; conv2] weights, tap-major, bf16
    b_ref  : (2*C_out, 1)           fused biases, f32
    o_ref  : (1, C_out, TL)         gated output tile (out_dtype)
    xp_ref : (C_in, J*TL + 2*pad)   bf16 zero-padded row, rebuilt once per batch
    acc_ref: (2*C_out, TL)          f32 fused accumulator
    """
    K = w_ref.shape[0]
    c_out = o_ref.shape[1]
    TL = o_ref.shape[2]

    # Build the zero-padded bf16 row once per batch (replaces the old
    # wrapper-side jnp.pad(x.astype(bf16)) HBM pre-pass).
    @pl.when(pl.program_id(1) == 0)
    def _():
        xp_ref[...] = jnp.zeros_like(xp_ref)
        xp_ref[:, pad:pad + seq_len] = x_ref[0].astype(xp_ref.dtype)

    # Aligned halo window for this tile: padded cols [j*TL, j*TL + TL + 2*pad).
    if num_l_tiles == 1:
        x_win = xp_ref[...]                                 # (C_in, TL + 2*pad)
    else:
        base = pl.multiple_of(pl.program_id(1) * TL, TL)    # TL multiple of 128 here
        x_win = xp_ref[:, pl.ds(base, TL + 2 * pad)]        # (C_in, TL + 2*pad)

    # Conv1d as K shifted MXU matmuls into ONE fused (conv1 | conv2) f32
    # accumulator held explicitly in VMEM scratch (bounds the live range).
    acc_ref[...] = jnp.dot(w_ref[0], x_win[:, 0:TL],
                           preferred_element_type=jnp.float32)
    for t in range(1, K):
        acc_ref[...] += jnp.dot(w_ref[t], x_win[:, t:t + TL],
                                preferred_element_type=jnp.float32)

    acc = acc_ref[...] + b_ref[...]            # bias, broadcast over lanes
    a = acc[:c_out, :]                         # conv1 path
    g = acc[c_out:, :]                         # conv2 path (gate)
    o_ref[0] = (a * jax.nn.sigmoid(g)).astype(o_ref.dtype)


def _vmem_capacity_bytes():
    """Physical per-core VMEM (v5e/v6e: 128 MiB, v7x: 64 MiB); conservative fallback."""
    try:
        return int(pltpu.get_tpu_info().vmem_capacity_bytes)
    except Exception:
        return 64 << 20


@functools.partial(jax.jit, static_argnames=("kernel_size", "out_dtype"))
def temporal_conv_layer(x, w1, b1, w2, b2, kernel_size=3, out_dtype=None):
    """x: (N, C_in, L); w*: (C_out, C_in, K); b*: (C_out,).  Returns (N, C_out, L)."""
    N, c_in, L = x.shape
    c_out = w1.shape[0]
    K = kernel_size
    # PyTorch padding=(K-1)//2 preserves L only for odd K (module default K=3).
    assert K % 2 == 1, "odd kernel_size required to preserve length"
    assert w1.shape == (c_out, c_in, K) and w2.shape == w1.shape
    pad = (K - 1) // 2
    out_dtype = jnp.dtype(x.dtype if out_dtype is None else out_dtype)

    # ---- L tiling: lane-dense tiles, preferring sizes that divide L exactly --
    if L >= 128:
        if L % 128 == 0 and L <= 1024:
            TL = L                               # whole row, single lane-dense tile
        else:
            TL = 128
            for cand in (1024, 512, 256):
                if L % cand == 0:
                    TL = cand
                    break
        # If no 128-multiple divides L the last tile is ragged; Pallas masks the
        # out-of-range lanes of the final store (no wrapper pad/slice pass).
    else:
        # TODO(synk): for L < 128, fold batch (or several rows) into the lane
        # axis to avoid narrow masked stores and better fill the MXU.
        TL = L
    J = -(-L // TL)                              # number of L tiles
    LPAD = J * TL + 2 * pad                      # padded scratch-row length

    # Fused, tap-major weights: (K, 2*C_out, C_in); fused bias: (2*C_out, 1).
    w_cat = jnp.concatenate(
        [jnp.transpose(w1, (2, 0, 1)), jnp.transpose(w2, (2, 0, 1))], axis=1
    ).astype(jnp.bfloat16)
    b_cat = jnp.concatenate([b1, b2], axis=0).reshape(2 * c_out, 1).astype(jnp.float32)

    # ---- VMEM budget / cost hint ---------------------------------------------
    x_bytes = x.dtype.itemsize
    o_bytes = out_dtype.itemsize
    w_bytes = int(w_cat.size) * 2 + int(b_cat.size) * 4
    vmem_need = (
        2 * c_in * L * x_bytes          # input row (revisited, double-buffered)
        + 2 * w_bytes                   # weights + bias (double-buffered)
        + 2 * c_out * TL * o_bytes      # output tile (double-buffered)
        + c_in * LPAD * 2               # bf16 padded-row scratch
        + 2 * c_out * TL * 4            # f32 fused accumulator scratch
    )
    vmem_limit = int(max(16 << 20, min(vmem_need + (4 << 20),
                                       (_vmem_capacity_bytes() * 3) // 4)))
    # TODO(synk): for very long L on v7x (64 MiB VMEM), tile the input along L
    # with a manually DMA'd halo window instead of keeping the whole row resident.

    cost = pl.CostEstimate(
        flops=2 * N * K * c_in * (2 * c_out) * L,
        transcendentals=N * c_out * L,
        bytes_accessed=N * c_in * L * x_bytes + w_bytes + N * c_out * L * o_bytes,
    )

    return pl.pallas_call(
        functools.partial(_glu_conv_kernel, pad=pad, seq_len=L, num_l_tiles=J),
        out_shape=jax.ShapeDtypeStruct((N, c_out, L), out_dtype),
        grid_spec=pltpu.PrefetchScalarGridSpec(
            num_scalar_prefetch=0,
            grid=(N, J),
            in_specs=[
                # Raw (un-padded) row: revisited across L tiles -> one DMA per n.
                pl.BlockSpec((1, c_in, L), lambda n, j: (n, 0, 0)),
                pl.BlockSpec((K, 2 * c_out, c_in), lambda n, j: (0, 0, 0)),
                pl.BlockSpec((2 * c_out, 1), lambda n, j: (0, 0)),
            ],
            out_specs=pl.BlockSpec((1, c_out, TL), lambda n, j: (n, 0, j)),
            scratch_shapes=[
                pltpu.VMEM((c_in, LPAD), jnp.bfloat16),
                pltpu.VMEM((2 * c_out, TL), jnp.float32),
            ],
        ),
        compiler_params=pltpu.CompilerParams(
            # Batch is the megacore-split axis; L tiles stay sequential on one
            # core (required for the per-batch scratch fill, and avoids both v7x
            # cores re-DMAing the same row).
            dimension_semantics=("parallel", "arbitrary"),
            vmem_limit_bytes=vmem_limit,
        ),
        cost_estimate=cost,
    )(x, w_cat, b_cat)


def _reference(x, w1, b1, w2, b2, precision=None):
    """Pure-JAX reference matching nn.Conv1d(padding=(k-1)//2) GLU forward."""
    dn = jax.lax.conv_dimension_numbers(x.shape, w1.shape, ("NCH", "OIH", "NCH"))
    pad = (w1.shape[2] - 1) // 2

    def conv(x_, w_, b_):
        y = jax.lax.conv_general_dilated(
            x_, w_, window_strides=(1,), padding=[(pad, pad)],
            dimension_numbers=dn, precision=precision,
        )
        return y + b_[None, :, None]

    return conv(x, w1, b1) * jax.nn.sigmoid(conv(x, w2, b2))


if __name__ == "__main__":
    N, C_IN, C_OUT, L, K = 2, 4, 8, 16, 3

    key = jax.random.PRNGKey(0)
    kx, kw1, kb1, kw2, kb2 = jax.random.split(key, 5)

    x = jax.random.normal(kx, (N, C_IN, L), jnp.float32)

    # Deterministic params mimicking nn.Conv1d default init (uniform +-1/sqrt(C_in*K)).
    bound = 1.0 / (C_IN * K) ** 0.5
    w1 = jax.random.uniform(kw1, (C_OUT, C_IN, K), jnp.float32, -bound, bound)
    b1 = jax.random.uniform(kb1, (C_OUT,), jnp.float32, -bound, bound)
    w2 = jax.random.uniform(kw2, (C_OUT, C_IN, K), jnp.float32, -bound, bound)
    b2 = jax.random.uniform(kb2, (C_OUT,), jnp.float32, -bound, bound)

    # Default path: module-faithful f32 output.
    out = jax.block_until_ready(temporal_conv_layer(x, w1, b1, w2, b2, kernel_size=K))
    assert out.shape == (N, C_OUT, L) and out.dtype == x.dtype, (out.shape, out.dtype)

    # Tight check vs. a reference fed the same bf16-rounded operands (kernel uses
    # bf16 MXU operands with f32 accumulation and an f32 epilogue).
    r32 = lambda a: a.astype(jnp.bfloat16).astype(jnp.float32)
    ref_bf16 = _reference(r32(x), r32(w1), b1, r32(w2), b2,
                          precision=jax.lax.Precision.HIGHEST)
    err_tight = float(jnp.max(jnp.abs(out - ref_bf16)))
    assert jnp.allclose(out, ref_bf16, atol=1e-4, rtol=1e-4), err_tight

    # Loose sanity check vs. the full-precision f32 module semantics.
    ref_f32 = _reference(x, w1, b1, w2, b2, precision=jax.lax.Precision.HIGHEST)
    err_loose = float(jnp.max(jnp.abs(out - ref_f32)))
    assert jnp.allclose(out, ref_f32, atol=1e-1, rtol=1e-1), err_loose

    # Reduced-HBM-traffic path: caller-chosen bf16 output.
    out_bf16 = jax.block_until_ready(
        temporal_conv_layer(x, w1, b1, w2, b2, kernel_size=K, out_dtype=jnp.bfloat16))
    assert out_bf16.shape == (N, C_OUT, L) and out_bf16.dtype == jnp.bfloat16
    err_bf16 = float(jnp.max(jnp.abs(out_bf16.astype(jnp.float32) - ref_bf16)))
    assert jnp.allclose(out_bf16.astype(jnp.float32), ref_bf16,
                        atol=5e-2, rtol=5e-2), err_bf16

    print("KERNEL_OK")
</pallas_src>

<mosaic_0001>
module attributes {stable_mosaic.version = 11 : i64} {
  func.func @_glu_conv_kernel(%arg0: i32, %arg1: i32, %arg2: memref<1x4x16xf32, #tpu.memory_space<vmem>>, %arg3: memref<3x16x4xbf16, #tpu.memory_space<vmem>>, %arg4: memref<16x1xf32, #tpu.memory_space<vmem>>, %arg5: memref<1x8x16xf32, #tpu.memory_space<vmem>>, %arg6: memref<4x18xbf16, #tpu.memory_space<vmem>>, %arg7: memref<16x16xf32, #tpu.memory_space<vmem>>) attributes {dimension_semantics = [#tpu.dimension_semantics<parallel>, #tpu.dimension_semantics<arbitrary>], iteration_bounds = array<i64: 2, 1>, scalar_prefetch = 0 : i64, scratch_operands = 2 : i64, tpu.core_type = #tpu.core_type<tc>, window_params = [{transform_indices = @transform_0, window_bounds = array<i64: 1, 4, 16>}, {pipeline_mode = #tpu.pipeline_mode<synchronous>, transform_indices = @transform_1, window_bounds = array<i64: 3, 16, 4>}, {pipeline_mode = #tpu.pipeline_mode<synchronous>, transform_indices = @transform_2, window_bounds = array<i64: 16, 1>}, {transform_indices = @transform_3, window_bounds = array<i64: 1, 8, 16>}]} {
    %c0_i32 = arith.constant 0 : i32
    %0 = arith.cmpi eq, %arg1, %c0_i32 : i32
    %1 = arith.extui %0 : i1 to i32
    %c0_i32_0 = arith.constant 0 : i32
    %2 = arith.cmpi ne, %1, %c0_i32_0 : i32
    scf.if %2 {
      %cst_29 = arith.constant 0.000000e+00 : bf16
      %38 = vector.broadcast %cst_29 : bf16 to vector<4x18xbf16>
      %c0_30 = arith.constant 0 : index
      %c0_31 = arith.constant 0 : index
      %39 = vector.load %arg6[%c0_30, %c0_31] : memref<4x18xbf16, #tpu.memory_space<vmem>>, vector<4x18xbf16>
      tpu.vector_store %arg6[%c0_30, %c0_31], %38 {strides = array<i32>} : memref<4x18xbf16, #tpu.memory_space<vmem>>, vector<4x18xbf16>,
      %c0_32 = arith.constant 0 : index
      %c0_33 = arith.constant 0 : index
      %c0_34 = arith.constant 0 : index
      %40 = vector.load %arg2[%c0_32, %c0_33, %c0_34] : memref<1x4x16xf32, #tpu.memory_space<vmem>>, vector<1x4x16xf32>
      %41 = vector.shape_cast %40 : vector<1x4x16xf32> to vector<4x16xf32>
      %42 = arith.truncf %41 : vector<4x16xf32> to vector<4x16xbf16>
      %c0_35 = arith.constant 0 : index
      %c1_36 = arith.constant 1 : index
      %43 = vector.load %arg6[%c0_35, %c1_36] : memref<4x18xbf16, #tpu.memory_space<vmem>>, vector<4x16xbf16>
      tpu.vector_store %arg6[%c0_35, %c1_36], %42 {strides = array<i32>} : memref<4x18xbf16, #tpu.memory_space<vmem>>, vector<4x16xbf16>,
    } else {
    }
    %c0 = arith.constant 0 : index
    %c0_1 = arith.constant 0 : index
    %3 = vector.load %arg6[%c0, %c0_1] : memref<4x18xbf16, #tpu.memory_space<vmem>>, vector<4x18xbf16>
    %c0_2 = arith.constant 0 : index
    %c0_3 = arith.constant 0 : index
    %c0_4 = arith.constant 0 : index
    %4 = vector.load %arg3[%c0_2, %c0_3, %c0_4] : memref<3x16x4xbf16, #tpu.memory_space<vmem>>, vector<1x16x4xbf16>
    %5 = vector.shape_cast %4 : vector<1x16x4xbf16> to vector<16x4xbf16>
    %6 = vector.extract_strided_slice %3 {offsets = [0, 0], sizes = [4, 16], strides = [1, 1]} : vector<4x18xbf16> to vector<4x16xbf16>
    %cst = arith.constant dense<0.000000e+00> : vector<16x16xf32>
    %7 = tpu.matmul %5, %6, %cst {dimension_numbers = #tpu.dot_dimension_numbers<[1], [0], [0], [1], [0, 0, 1, 1], [], []>} : vector<16x4xbf16>, vector<4x16xbf16>, vector<16x16xf32> -> vector<16x16xf32>
    %c0_5 = arith.constant 0 : index
    %c0_6 = arith.constant 0 : index
    %8 = vector.load %arg7[%c0_5, %c0_6] : memref<16x16xf32, #tpu.memory_space<vmem>>, vector<16x16xf32>
    tpu.vector_store %arg7[%c0_5, %c0_6], %7 {strides = array<i32>} : memref<16x16xf32, #tpu.memory_space<vmem>>, vector<16x16xf32>,
    %c0_7 = arith.constant 0 : index
    %c0_8 = arith.constant 0 : index
    %9 = vector.load %arg7[%c0_7, %c0_8] : memref<16x16xf32, #tpu.memory_space<vmem>>, vector<16x16xf32>
    %c1 = arith.constant 1 : index
    %c0_9 = arith.constant 0 : index
    %c0_10 = arith.constant 0 : index
    %10 = vector.load %arg3[%c1, %c0_9, %c0_10] : memref<3x16x4xbf16, #tpu.memory_space<vmem>>, vector<1x16x4xbf16>
    %11 = vector.shape_cast %10 : vector<1x16x4xbf16> to vector<16x4xbf16>
    %12 = vector.extract_strided_slice %3 {offsets = [0, 1], sizes = [4, 16], strides = [1, 1]} : vector<4x18xbf16> to vector<4x16xbf16>
    %cst_11 = arith.constant dense<0.000000e+00> : vector<16x16xf32>
    %13 = tpu.matmul %11, %12, %cst_11 {dimension_numbers = #tpu.dot_dimension_numbers<[1], [0], [0], [1], [0, 0, 1, 1], [], []>} : vector<16x4xbf16>, vector<4x16xbf16>, vector<16x16xf32> -> vector<16x16xf32>
    %14 = arith.addf %9, %13 : vector<16x16xf32>
    %c0_12 = arith.constant 0 : index
    %c0_13 = arith.constant 0 : index
    %15 = vector.load %arg7[%c0_12, %c0_13] : memref<16x16xf32, #tpu.memory_space<vmem>>, vector<16x16xf32>
    tpu.vector_store %arg7[%c0_12, %c0_13], %14 {strides = array<i32>} : memref<16x16xf32, #tpu.memory_space<vmem>>, vector<16x16xf32>,
    %c0_14 = arith.constant 0 : index
    %c0_15 = arith.constant 0 : index
    %16 = vector.load %arg7[%c0_14, %c0_15] : memref<16x16xf32, #tpu.memory_space<vmem>>, vector<16x16xf32>
    %c2 = arith.constant 2 : index
    %c0_16 = arith.constant 0 : index
    %c0_17 = arith.constant 0 : index
    %17 = vector.load %arg3[%c2, %c0_16, %c0_17] : memref<3x16x4xbf16, #tpu.memory_space<vmem>>, vector<1x16x4xbf16>
    %18 = vector.shape_cast %17 : vector<1x16x4xbf16> to vector<16x4xbf16>
    %19 = vector.extract_strided_slice %3 {offsets = [0, 2], sizes = [4, 16], strides = [1, 1]} : vector<4x18xbf16> to vector<4x16xbf16>
    %cst_18 = arith.constant dense<0.000000e+00> : vector<16x16xf32>
    %20 = tpu.matmul %18, %19, %cst_18 {dimension_numbers = #tpu.dot_dimension_numbers<[1], [0], [0], [1], [0, 0, 1, 1], [], []>} : vector<16x4xbf16>, vector<4x16xbf16>, vector<16x16xf32> -> vector<16x16xf32>
    %21 = arith.addf %16, %20 : vector<16x16xf32>
    %c0_19 = arith.constant 0 : index
    %c0_20 = arith.constant 0 : index
    %22 = vector.load %arg7[%c0_19, %c0_20] : memref<16x16xf32, #tpu.memory_space<vmem>>, vector<16x16xf32>
    tpu.vector_store %arg7[%c0_19, %c0_20], %21 {strides = array<i32>} : memref<16x16xf32, #tpu.memory_space<vmem>>, vector<16x16xf32>,
    %c0_21 = arith.constant 0 : index
    %c0_22 = arith.constant 0 : index
    %23 = vector.load %arg7[%c0_21, %c0_22] : memref<16x16xf32, #tpu.memory_space<vmem>>, vector<16x16xf32>
    %c0_23 = arith.constant 0 : index
    %c0_24 = arith.constant 0 : index
    %24 = vector.load %arg4[%c0_23, %c0_24] : memref<16x1xf32, #tpu.memory_space<vmem>>, vector<16x1xf32>
    %25 = vector.broadcast %24 : vector<16x1xf32> to vector<16x16xf32>
    %26 = arith.addf %23, %25 : vector<16x16xf32>
    %27 = vector.extract_strided_slice %26 {offsets = [0, 0], sizes = [8, 16], strides = [1, 1]} : vector<16x16xf32> to vector<8x16xf32>
    %28 = vector.extract_strided_slice %26 {offsets = [8, 0], sizes = [8, 16], strides = [1, 1]} : vector<16x16xf32> to vector<8x16xf32>
    %29 = arith.negf %28 : vector<8x16xf32>
    %30 = math.exp %29 : vector<8x16xf32>
    %cst_25 = arith.constant 1.000000e+00 : f32
    %31 = vector.broadcast %cst_25 : f32 to vector<8x16xf32>
    %32 = arith.addf %31, %30 : vector<8x16xf32>
    %33 = arith.divf %31, %32 : vector<8x16xf32>
    %34 = arith.mulf %27, %33 : vector<8x16xf32>
    %c0_26 = arith.constant 0 : index
    %c0_27 = arith.constant 0 : index
    %c0_28 = arith.constant 0 : index
    %35 = vector.load %arg5[%c0_26, %c0_27, %c0_28] : memref<1x8x16xf32, #tpu.memory_space<vmem>>, vector<1x8x16xf32>
    %36 = vector.shape_cast %35 : vector<1x8x16xf32> to vector<8x16xf32>
    %37 = vector.shape_cast %34 : vector<8x16xf32> to vector<1x8x16xf32>
    tpu.vector_store %arg5[%c0_26, %c0_27, %c0_28], %37 {strides = array<i32>} : memref<1x8x16xf32, #tpu.memory_space<vmem>>, vector<1x8x16xf32>,
    return
  }
  func.func @transform_0(%arg0: i32, %arg1: i32) -> (i32, i32, i32) {
    %c0_i32 = arith.constant 0 : i32
    %c0_i32_0 = arith.constant 0 : i32
    %c0_i32_1 = arith.constant 0 : i32
    return %arg0, %c0_i32, %c0_i32_0 : i32, i32, i32
  }
  func.func @transform_1(%arg0: i32, %arg1: i32) -> (i32, i32, i32) {
    %c0_i32 = arith.constant 0 : i32
    %c0_i32_0 = arith.constant 0 : i32
    %c0_i32_1 = arith.constant 0 : i32
    %c0_i32_2 = arith.constant 0 : i32
    return %c0_i32, %c0_i32_0, %c0_i32_1 : i32, i32, i32
  }
  func.func @transform_2(%arg0: i32, %arg1: i32) -> (i32, i32) {
    %c0_i32 = arith.constant 0 : i32
    %c0_i32_0 = arith.constant 0 : i32
    %c0_i32_1 = arith.constant 0 : i32
    return %c0_i32, %c0_i32_0 : i32, i32
  }
  func.func @transform_3(%arg0: i32, %arg1: i32) -> (i32, i32, i32) {
    %c0_i32 = arith.constant 0 : i32
    %c0_i32_0 = arith.constant 0 : i32
    return %arg0, %c0_i32, %arg1 : i32, i32, i32
  }
}

</mosaic_0001>

<llo_original>
// kernel: temporal_conv_layer.1
$region0: #{temporal_conv_layer.1}
  #allocation0 [shape = 'u32[]', space=smem, size = 0x4, offset = 0x4, fixed_abs, tag = 'smem constant byte address 0x4 - core index']
  #allocation1 [shape = 'u32[144,128]{1,0:T(1,128)}', space=vmem, size = 0x12000, scoped, tag = 'internal scratch']
  #allocation2 [shape = 'bf16[4,18]{1,0:T(4,128)(2,1)}', space=vmem, size = 0x400, scoped, tag = 'scratch operand']
  #allocation3 [shape = 'f32[16,16]{1,0:T(8,128)}', space=vmem, size = 0x2000, scoped, tag = 'scratch operand']
  %s0 = inlined_call_operand.vmem [shape: f32[2,4,16], index: 0, kind: input, shape index: {}]
  %s1 = inlined_call_operand.vmem [shape: bf16[3,16,4], index: 1, kind: input, shape index: {}]
  %s2 = inlined_call_operand.vmem [shape: f32[16,1], index: 2, kind: input, shape index: {}]
  %s3 = inlined_call_operand.hbm [shape: f32[2,8,16], index: 3, kind: output, shape index: {}]
  %s4 = sld [smem:[#allocation0]]
  $region49: #{temporal_conv_layer.1} parent=0
    _
  %s6 = ssub.s32 1, %s4
  %s7 = scalar_select 0, %s6, %s4
  $region1: #{temporal_conv_layer.1} parent=0
    #allocation4 [shape = 'u8[8192]{0}', space=vmem, size = 0x2000, scoped, tag = 'output window, operand 0']
    #allocation5 [shape = 's32[2]{0}', space=sflag, size = 0x8, scoped, tag = 'scoped memory for temporal_conv_layer.1']
    %8 = vsyncpa [#allocation5], 0
    %s9 = scalar_lea.sflag [#allocation5], 1
    %10 = vsyncpa %s9, 0
    loop: start=0, step=1, limit=4
    $region2: #{temporal_conv_layer.1} parent=1 // loop_pre_header
      _
    $region3: #{temporal_conv_layer.1} parent=1 // loop_header
      %s12 = sphi 0, %s16
      %p13 = scmp.ge.s32.totalorder %s12, 4
      %s19 = sphi 0, %s31
      %s20 = sphi 0, %s27
      %s21 = sphi 0, %s19
      %s22 = sphi 0, %s20
      %s23 = sphi 0, %s21
      %s24 = sphi 0, %s22
      %s34 = sphi 0, %s36
      %s37 = sphi 0, %s34
      %s38 = sphi 0, %s37
      %s54 = sphi 0, %s38
      %s58 = sphi 0, %s58
      %s60 = sphi 0, %s58
      %s61 = sphi 0, %s60
      %s75 = sphi 0, %s61
      %s79 = sphi 0, %s79
      %s81 = sphi 0, %s79
      %s82 = sphi 0, %s81
      %s96 = sphi 0, %s82
      %s104 = sphi 0, %s106
      %s107 = sphi 0, %s104
      %s108 = sphi 0, %s107
      %s124 = sphi 0, %s108
    $region4: #{temporal_conv_layer.1} parent=1 // loop_header_branch
      %15 = sbr.rel (%p13) target = $region8
    $region5: #{temporal_conv_layer.1} parent=1 // loop_body
      %s17 = ssub.s32 %s12, 1
      %s18 = ssub.s32 %s12, 2
      %s25 = sadd.s32 1, %s20
      %p26 = scmp.ge.s32.totalorder %s25, 1
      %s27 = scalar_select %p26, 0, %s25
      %s28 = sadd.s32 1, %s19
      %s29 = scalar_select %p26, %s28, %s19
      %p30 = scmp.ge.s32.totalorder %s29, 2
      %s31 = scalar_select %p30, 0, %s29
      %s32 = ssub.s32 %s19, %s31
      %p33 = scmp.eq.s32.totalorder %s32, 0
      %s35 = sadd.s32 %s34, 1
      %s36 = scalar_select %p33, %s34, %s35
      %p39 = pneg %p33
      %p40 = scmp.eq.s32.totalorder %s12, 1
      %p41 = por %p39, %p40
      %p42 = scmp.ne.s32.totalorder %s34, %s37
      %p43 = scmp.eq.s32.totalorder %s12, 0
      %p44 = por %p42, %p43
      %p45 = scmp.ne.s32.totalorder %s34, %s37
      %p46 = scmp.eq.s32.totalorder %s17, 1
      %p47 = por %p45, %p46
      %p48 = scmp.ne.s32.totalorder %s37, %s38
      %p49 = scmp.eq.s32.totalorder %s17, 0
      %p50 = por %p48, %p49
      %p51 = scmp.ne.s32.totalorder %s37, %s38
      %p52 = scmp.eq.s32.totalorder %s18, 1
      %p53 = por %p51, %p52
      %p55 = scmp.ne.s32.totalorder %s38, %s54
      %p56 = scmp.eq.s32.totalorder %s18, 0
      %p57 = por %p55, %p56
      %s59 = sadd.s32 %s58, 1
      %p62 = scmp.eq.s32.totalorder %s12, 1
      %p63 = scmp.ne.s32.totalorder %s58, %s60
      %p64 = scmp.eq.s32.totalorder %s12, 0
      %p65 = por %p63, %p64
      %p66 = scmp.ne.s32.totalorder %s58, %s60
      %p67 = scmp.eq.s32.totalorder %s17, 1
      %p68 = por %p66, %p67
      %p69 = scmp.ne.s32.totalorder %s60, %s61
      %p70 = scmp.eq.s32.totalorder %s17, 0
      %p71 = por %p69, %p70
      %p72 = scmp.ne.s32.totalorder %s60, %s61
      %p73 = scmp.eq.s32.totalorder %s18, 1
      %p74 = por %p72, %p73
      %p76 = scmp.ne.s32.totalorder %s61, %s75
      %p77 = scmp.eq.s32.totalorder %s18, 0
      %p78 = por %p76, %p77
      %s80 = sadd.s32 %s79, 1
      %p83 = scmp.eq.s32.totalorder %s12, 1
      %p84 = scmp.ne.s32.totalorder %s79, %s81
      %p85 = scmp.eq.s32.totalorder %s12, 0
      %p86 = por %p84, %p85
      %p87 = scmp.ne.s32.totalorder %s79, %s81
      %p88 = scmp.eq.s32.totalorder %s17, 1
      %p89 = por %p87, %p88
      %p90 = scmp.ne.s32.totalorder %s81, %s82
      %p91 = scmp.eq.s32.totalorder %s17, 0
      %p92 = por %p90, %p91
      %p93 = scmp.ne.s32.totalorder %s81, %s82
      %p94 = scmp.eq.s32.totalorder %s18, 1
      %p95 = por %p93, %p94
      %p97 = scmp.ne.s32.totalorder %s82, %s96
      %p98 = scmp.eq.s32.totalorder %s18, 0
      %p99 = por %p97, %p98
      %s100 = ssub.s32 %s19, %s31
      %s101 = ssub.s32 %s20, %s27
      %s102 = sor.u32 %s100, %s101
      %p103 = scmp.eq.s32.totalorder %s102, 0
      %s105 = sadd.s32 %s104, 1
      %s106 = scalar_select %p103, %s104, %s105
      %p109 = pneg %p103
      %p110 = scmp.eq.s32.totalorder %s12, 1
      %p111 = por %p109, %p110
      %p112 = scmp.ne.s32.totalorder %s104, %s107
      %p113 = scmp.eq.s32.totalorder %s12, 0
      %p114 = por %p112, %p113
      %p115 = scmp.ne.s32.totalorder %s104, %s107
      %p116 = scmp.eq.s32.totalorder %s17, 1
      %p117 = por %p115, %p116
      %p118 = scmp.ne.s32.totalorder %s107, %s108
      %p119 = scmp.eq.s32.totalorder %s17, 0
      %p120 = por %p118, %p119
      %p121 = scmp.ne.s32.totalorder %s107, %s108
      %p122 = scmp.eq.s32.totalorder %s18, 1
      %p123 = por %p121, %p122
      %p125 = scmp.ne.s32.totalorder %s108, %s124
      %p126 = scmp.eq.s32.totalorder %s18, 0
      %p127 = por %p125, %p126
      %p128 = scmp.le.s32.totalorder 1, %s12
      %p129 = scmp.lt.s32.totalorder %s12, 3
      %p130 = pnand %p128, %p129
      %p131 = pneg %p130
      // Predicated region
      $region9: #{temporal_conv_layer.1} parent=5 // pred_check
        _
      $region10: #{temporal_conv_layer.1} parent=5 // pred_check_branch
        %133 = sbr.rel (%p130) target = $region12
      $region11: #{temporal_conv_layer.1} parent=5 // pred_region
        %s134 = ssub.s32 %s12, 1
        // Predicated region
        $region13: #{temporal_conv_layer.1} parent=11 // pred_check
          %p135 = pneg %p71
        $region14: #{temporal_conv_layer.1} parent=11 // pred_check_branch
          %137 = sbr.rel (%p135) target = $region16
        $region15: #{temporal_conv_layer.1} parent=11 // pred_region
          _
        $region16: #{temporal_conv_layer.1} parent=11 // pred_fallthru
          _
        // Predicated region
        $region17: #{temporal_conv_layer.1} parent=11 // pred_check
          %p138 = pneg %p92
        $region18: #{temporal_conv_layer.1} parent=11 // pred_check_branch
          %140 = sbr.rel (%p138) target = $region20
        $region19: #{temporal_conv_layer.1} parent=11 // pred_region
          _
        $region20: #{temporal_conv_layer.1} parent=11 // pred_fallthru
          _
      $region12: #{temporal_conv_layer.1} parent=5 // pred_fallthru
        _
      %p141 = scmp.lt.s32.totalorder %s12, 2
      // Predicated region
      $region21: #{temporal_conv_layer.1} parent=5 // pred_check
        %p142 = pneg %p141
      $region22: #{temporal_conv_layer.1} parent=5 // pred_check_branch
        %144 = sbr.rel (%p142) target = $region24
      $region23: #{temporal_conv_layer.1} parent=5 // pred_region
        // Predicated region
        $region25: #{temporal_conv_layer.1} parent=23 // pred_check
          %p145 = pneg %p44
        $region26: #{temporal_conv_layer.1} parent=23 // pred_check_branch
          %147 = sbr.rel (%p145) target = $region28
        $region27: #{temporal_conv_layer.1} parent=23 // pred_region
          %p148 = scmp.lt.s32.totalorder %s19, 1
          %s149 = scalar_select %p148, %s19, 1
          %s150 = smul.addr %s149, 4
          %s151 = scalar_lea.vmem %s0, %s150
        $region28: #{temporal_conv_layer.1} parent=23 // pred_fallthru
          _
      $region24: #{temporal_conv_layer.1} parent=5 // pred_fallthru
        _
      %p152 = scmp.le.s32.totalorder 1, %s12
      %p153 = scmp.lt.s32.totalorder %s12, 3
      %p154 = pnand %p152, %p153
      %p155 = pneg %p154
      // Predicated region
      $region29: #{temporal_conv_layer.1} parent=5 // pred_check
        _
      $region30: #{temporal_conv_layer.1} parent=5 // pred_check_branch
        %157 = sbr.rel (%p154) target = $region32
      $region31: #{temporal_conv_layer.1} parent=5 // pred_region
        %s158 = ssub.s32 %s12, 1
        %p159 = scmp.lt.s32.totalorder %s21, 1
        %s160 = scalar_select %p159, %s21, 1
        %s161 = smul.addr %s160, 4
        %s162 = scalar_lea.vmem %s0, %s161
        %p163 = pneg %p50
        %p164 = pneg %p47
        %p165 = pneg %p71
        %p166 = pneg %p68
        %p167 = pneg %p92
        %p168 = pneg %p89
        %p169 = pneg %p120
        %p170 = pneg %p117
        %s171 = sand.u32 %s107, 1
        %s172 = scalar_lea.sflag [#allocation5], %s171
        %s173 = sand.u32 %s107, 1
        %s174 = smul.addr %s173, 8
        %s175 = scalar_lea.vmem [#allocation4], %s174
        %p176 = scmp.lt.s32.totalorder %s21, 1
        %s177 = scalar_select %p176, %s21, 1
        %s178 = smul.addr %s177, 4
        %s179 = scalar_lea.vmem %s0, %s178
        %p181 = scmp.eq.s32.totalorder %s22, 0
        // Predicated region
        $region33: #{temporal_conv_layer.1} parent=31 // pred_check
          %p182 = pneg %p181
        $region34: #{temporal_conv_layer.1} parent=31 // pred_check_branch
          %184 = sbr.rel (%p182) target = $region36
        $region35: #{temporal_conv_layer.1} parent=31 // pred_region
          %vm185 = vcmask 140288
          %186 = vst.msk [vmem:[#allocation2] sm:$0x3] %vm185, 0
          %v187 = vld [vmem:[%s179] sm:$0xf]
          %v188 = vpack.c.bf16 %v187, %v187
          %v191 = vunpack.c.l.s4 1983009808
          %v192 = vunpack.c.0.s8 %v191
          %v193 = vlaneseq
          %v194 = vshrl.u32 %v193, 7
          %v195 = vsub.s32 %v192, %v194
          %v196 = vrot.slane %v188, %v195
          %197 = vrot.lane.b32.xlu0 %v196, 1
          %v198 = vpop.permute.xlu0 %197
          %vm200 = vcmask 132104
          %201 = vst.msk [vmem:[#allocation2] sm:$0x3] %vm200, %v198
        $region36: #{temporal_conv_layer.1} parent=31 // pred_fallthru
          _
        %v202 = vld [vmem:[#allocation2] sm:$0x3]
        %v203 = vld [vmem:[%s1] sm:$0xf]
        %v204 = vld [vmem:[%s1 + $0x4] sm:$0xf]
        %v207 = vunpack.c.l.b16 %v203
        %v208 = vunpack.c.l.b16 %v204
        %v209 = vpack.c.b16 %v208, %v207
        %vm210 = vcmask 31744
        %v212 = vsel %vm210, %v209, 0
        %vm214 = vcmask 1041408
        %v216 = vsel %vm214, %v202, 0
        %218 = vmatprep.subr.bf16.mxu0 0
        %219 = vmatpush1.bf16.msra.mxu0 %v216
        %220 = vmatprep.subr.bf16.mxu0 0
        %221 = vmatpush1.bf16.msra.mxu0 0
        %222 = vmatprep.subr.bf16.mxu0 0
        %223 = vmatpush1.bf16.msra.mxu0 0
        %224 = vmatprep.subr.bf16.mxu0 0
        %225 = vmatpush1.bf16.msra.mxu0 0
        %226 = vmatprep.subr.bf16.mxu0 0
        %227 = vmatpush1.bf16.msra.mxu0 0
        %228 = vmatprep.subr.bf16.mxu0 0
        %229 = vmatpush1.bf16.msra.mxu0 0
        %230 = vmatprep.subr.bf16.mxu0 0
        %231 = vmatpush1.bf16.msra.mxu0 0
        %232 = vmatprep.subr.bf16.mxu0 0
        %233 = vmatpush1.bf16.msra.mxu0 0
        %234 = vmatprep.subr.bf16.mxu0 0
        %235 = vmatpush1.bf16.msra.mxu0 0
        %236 = vmatprep.subr.bf16.mxu0 0
        %237 = vmatpush1.bf16.msra.mxu0 0
        %238 = vmatprep.subr.bf16.mxu0 0
        %239 = vmatpush1.bf16.msra.mxu0 0
        %240 = vmatprep.subr.bf16.mxu0 0
        %241 = vmatpush1.bf16.msra.mxu0 0
        %242 = vmatprep.subr.bf16.mxu0 0
        %243 = vmatpush1.bf16.msra.mxu0 0
        %244 = vmatprep.subr.bf16.mxu0 0
        %245 = vmatpush1.bf16.msra.mxu0 0
        %246 = vmatprep.subr.bf16.mxu0 0
        %247 = vmatpush1.bf16.msra.mxu0 0
        %248 = vmatprep.subr.bf16.mxu0 0
        %249 = vmatpush1.bf16.msra.mxu0 0
        %250 = vmatprep.mubr.bf16.mxu0 0
        %251 = vmatmul.mubr.bf16.gmra.mrb[0].mxu0 %v212
        %v252 = vpop.f32.mrb[0].mxu0
        %v253 = vadd.f32 0.0, %v252
        %v254 = vpop.f32.mrb[0].mxu0
        %v255 = vpop.f32.mrb[0].mxu0
        %v256 = vadd.f32 0.0, %v255
        %v257 = vpop.f32.mrb[0].mxu0
        %258 = vdwg.mxu0
        %vm259 = vcmask 130048
        %260 = vst.msk [vmem:[#allocation3] sm:$0xff] %vm259, %v253
        %261 = vst.msk [vmem:[#allocation3 + $0x8] sm:$0xff] %vm259, %v256
        %v262 = vld [vmem:[#allocation3] sm:$0xff]
        %v263 = vld [vmem:[#allocation3 + $0x8] sm:$0xff]
        %s264 = scalar_lea.vmem %s1, 8
        %v265 = vld [vmem:[%s264] sm:$0xf]
        %v266 = vld [vmem:[%s264 + $0x4] sm:$0xf]
        %v269 = vunpack.c.l.b16 %v265
        %v270 = vunpack.c.l.b16 %v266
        %v271 = vpack.c.b16 %v270, %v269
        %v274 = vunpack.c.l.s4 1983009808
        %v275 = vunpack.c.0.s8 %v274
        %v276 = vlaneseq
        %v277 = vshrl.u32 %v276, 7
        %v278 = vsub.s32 %v275, %v277
        %v279 = vrot.slane %v202, %v278
        %280 = vrot.lane.b32.xlu0 %v279, 127
        %v281 = vpop.permute.xlu0 %280
        %v283 = vsel %vm210, %v271, 0
        %v286 = vsel %vm214, %v281, 0
        %288 = vmatprep.subr.bf16.mxu0 0
        %289 = vmatpush1.bf16.msra.mxu0 %v286
        %290 = vmatprep.subr.bf16.mxu0 0
        %291 = vmatpush1.bf16.msra.mxu0 0
        %292 = vmatprep.subr.bf16.mxu0 0
        %293 = vmatpush1.bf16.msra.mxu0 0
        %294 = vmatprep.subr.bf16.mxu0 0
        %295 = vmatpush1.bf16.msra.mxu0 0
        %296 = vmatprep.subr.bf16.mxu0 0
        %297 = vmatpush1.bf16.msra.mxu0 0
        %298 = vmatprep.subr.bf16.mxu0 0
        %299 = vmatpush1.bf16.msra.mxu0 0
        %300 = vmatprep.subr.bf16.mxu0 0
        %301 = vmatpush1.bf16.msra.mxu0 0
        %302 = vmatprep.subr.bf16.mxu0 0
        %303 = vmatpush1.bf16.msra.mxu0 0
        %304 = vmatprep.subr.bf16.mxu0 0
        %305 = vmatpush1.bf16.msra.mxu0 0
        %306 = vmatprep.subr.bf16.mxu0 0
        %307 = vmatpush1.bf16.msra.mxu0 0
        %308 = vmatprep.subr.bf16.mxu0 0
        %309 = vmatpush1.bf16.msra.mxu0 0
        %310 = vmatprep.subr.bf16.mxu0 0
        %311 = vmatpush1.bf16.msra.mxu0 0
        %312 = vmatprep.subr.bf16.mxu0 0
        %313 = vmatpush1.bf16.msra.mxu0 0
        %314 = vmatprep.subr.bf16.mxu0 0
        %315 = vmatpush1.bf16.msra.mxu0 0
        %316 = vmatprep.subr.bf16.mxu0 0
        %317 = vmatpush1.bf16.msra.mxu0 0
        %318 = vmatprep.subr.bf16.mxu0 0
        %319 = vmatpush1.bf16.msra.mxu0 0
        %320 = vmatprep.mubr.bf16.mxu0 0
        %321 = vmatmul.mubr.bf16.gmra.mrb[0].mxu0 %v283
        %v322 = vpop.f32.mrb[0].mxu0
        %v323 = vadd.f32 0.0, %v322
        %v324 = vpop.f32.mrb[0].mxu0
        %v325 = vpop.f32.mrb[0].mxu0
        %v326 = vadd.f32 0.0, %v325
        %v327 = vpop.f32.mrb[0].mxu0
        %328 = vdwg.mxu0
        %v329 = vadd.f32 %v262, %v323
        %v330 = vadd.f32 %v263, %v326
        %331 = vst.msk [vmem:[#allocation3] sm:$0xff] %vm259, %v329
        %332 = vst.msk [vmem:[#allocation3 + $0x8] sm:$0xff] %vm259, %v330
        %v333 = vld [vmem:[#allocation3] sm:$0xff]
        %v334 = vld [vmem:[#allocation3 + $0x8] sm:$0xff]
        %s335 = scalar_lea.vmem %s1, 16
        %v336 = vld [vmem:[%s335] sm:$0xf]
        %v337 = vld [vmem:[%s335 + $0x4] sm:$0xf]
        %v340 = vunpack.c.l.b16 %v336
        %v341 = vunpack.c.l.b16 %v337
        %v342 = vpack.c.b16 %v341, %v340
        %343 = vrot.lane.b32.xlu0 %v279, 126
        %v344 = vpop.permute.xlu0 %343
        %v346 = vsel %vm210, %v342, 0
        %v349 = vsel %vm214, %v344, 0
        %351 = vmatprep.subr.bf16.mxu0 0
        %352 = vmatpush1.bf16.msra.mxu0 %v349
        %353 = vmatprep.subr.bf16.mxu0 0
        %354 = vmatpush1.bf16.msra.mxu0 0
        %355 = vmatprep.subr.bf16.mxu0 0
        %356 = vmatpush1.bf16.msra.mxu0 0
        %357 = vmatprep.subr.bf16.mxu0 0
        %358 = vmatpush1.bf16.msra.mxu0 0
        %359 = vmatprep.subr.bf16.mxu0 0
        %360 = vmatpush1.bf16.msra.mxu0 0
        %361 = vmatprep.subr.bf16.mxu0 0
        %362 = vmatpush1.bf16.msra.mxu0 0
        %363 = vmatprep.subr.bf16.mxu0 0
        %364 = vmatpush1.bf16.msra.mxu0 0
        %365 = vmatprep.subr.bf16.mxu0 0
        %366 = vmatpush1.bf16.msra.mxu0 0
        %367 = vmatprep.subr.bf16.mxu0 0
        %368 = vmatpush1.bf16.msra.mxu0 0
        %369 = vmatprep.subr.bf16.mxu0 0
        %370 = vmatpush1.bf16.msra.mxu0 0
        %371 = vmatprep.subr.bf16.mxu0 0
        %372 = vmatpush1.bf16.msra.mxu0 0
        %373 = vmatprep.subr.bf16.mxu0 0
        %374 = vmatpush1.bf16.msra.mxu0 0
        %375 = vmatprep.subr.bf16.mxu0 0
        %376 = vmatpush1.bf16.msra.mxu0 0
        %377 = vmatprep.subr.bf16.mxu0 0
        %378 = vmatpush1.bf16.msra.mxu0 0
        %379 = vmatprep.subr.bf16.mxu0 0
        %380 = vmatpush1.bf16.msra.mxu0 0
        %381 = vmatprep.subr.bf16.mxu0 0
        %382 = vmatpush1.bf16.msra.mxu0 0
        %383 = vmatprep.mubr.bf16.mxu0 0
        %384 = vmatmul.mubr.bf16.gmra.mrb[0].mxu0 %v346
        %v385 = vpop.f32.mrb[0].mxu0
        %v386 = vadd.f32 0.0, %v385
        %v387 = vpop.f32.mrb[0].mxu0
        %v388 = vpop.f32.mrb[0].mxu0
        %v389 = vadd.f32 0.0, %v388
        %v390 = vpop.f32.mrb[0].mxu0
        %391 = vdwg.mxu0
        %v392 = vadd.f32 %v333, %v386
        %v393 = vadd.f32 %v334, %v389
        %394 = vst.msk [vmem:[#allocation3] sm:$0xff] %vm259, %v392
        %395 = vst.msk [vmem:[#allocation3 + $0x8] sm:$0xff] %vm259, %v393
        %v396 = vld [vmem:[#allocation3] sm:$0xff]
        %v397 = vld [vmem:[#allocation3 + $0x8] sm:$0xff]
        %v398 = vld [vmem:[%s2] sm:$0xff]
        %v399 = vld [vmem:[%s2 + $0x8] sm:$0xff]
        %401 = vset.pattern.permute.xlu0 0
        %402 = vperm.xlu0 %401, %v398
        %v403 = vpop.permute.xlu0 %402
        %406 = vset.pattern.permute.xlu0 0
        %407 = vperm.xlu0 %406, %v399
        %v408 = vpop.permute.xlu0 %407
        %v410 = vadd.f32 %v396, %v403
        %v411 = vadd.f32 %v397, %v408
        %v412 = vxor.u32 %v411, 2147483648
        %v413 = vmul.f32 %v412, 1.442695
        %v414 = vpow.pop %v413
        %v415 = vadd.f32 %v414, 1.0
        %v416 = vrcp.pop %v415
        %v417 = vmul.f32 1.0, %v416
        %v418 = vmul.f32 %v410, %v417
        %419 = vst.msk [vmem:[%s175] sm:$0xff] %vm259, %v418
        %s420 = sand.u32 %s107, 1
        %s421 = scalar_lea.sflag [#allocation5], %s420
        %s422 = sand.u32 %s107, 1
        %s423 = smul.addr %s422, 8
        %s424 = scalar_lea.vmem [#allocation4], %s423
        // Predicated region
        $region37: #{temporal_conv_layer.1} parent=31 // pred_check
          %p425 = pneg %p117
        $region38: #{temporal_conv_layer.1} parent=31 // pred_check_branch
          %427 = sbr.rel (%p425) target = $region40
        $region39: #{temporal_conv_layer.1} parent=31 // pred_region
          %s429 = ssub.s32 128, 128
          %430 = vsyncadd %s421, %s429
          %s431 = sadd.s32 %s22, %s21
          %s432 = smul.addr %s431, 128
          %s433 = scalar_lea.hbm %s3, %s432
          %s435 = sshll.u32 %s424, 4
          %s436 = int_to_ptr.vmem [resolvable:$true] %s435
          %438 = dma.vmem_to_hbm [thread:$0]  %s436, 128, %s433, %s421
        $region40: #{temporal_conv_layer.1} parent=31 // pred_fallthru
          _
      $region32: #{temporal_conv_layer.1} parent=5 // pred_fallthru
        _
      %p439 = scmp.le.s32.totalorder 2, %s12
      // Predicated region
      $region41: #{temporal_conv_layer.1} parent=5 // pred_check
        %p440 = pneg %p439
      $region42: #{temporal_conv_layer.1} parent=5 // pred_check_branch
        %442 = sbr.rel (%p440) target = $region44
      $region43: #{temporal_conv_layer.1} parent=5 // pred_region
        %s443 = ssub.s32 %s12, 2
        // Predicated region
        $region45: #{temporal_conv_layer.1} parent=43 // pred_check
          %p444 = pneg %p123
        $region46: #{temporal_conv_layer.1} parent=43 // pred_check_branch
          %446 = sbr.rel (%p444) target = $region48
        $region47: #{temporal_conv_layer.1} parent=43 // pred_region
          %s447 = sand.u32 %s108, 1
          %s448 = scalar_lea.sflag [#allocation5], %s447
          %s449 = sand.u32 %s108, 1
          %s450 = smul.addr %s449, 8
          %s451 = scalar_lea.vmem [#allocation4], %s450
          %452 = dma.done %s448, 128
        $region48: #{temporal_conv_layer.1} parent=43 // pred_fallthru
          _
      $region44: #{temporal_conv_layer.1} parent=5 // pred_fallthru
        _
    $region6: #{temporal_conv_layer.1} parent=1 // loop_footer
      %s16 = sadd.s32 1, %s12
    $region7: #{temporal_conv_layer.1} parent=1 // loop_footer_branch
      %11 = sbr.rel target = $region3
    $region8: #{temporal_conv_layer.1} parent=1 // loop_exit
      _
    %453 = vsyncpa [#allocation5], 1
    %s454 = scalar_lea.sflag [#allocation5], 1
    %455 = vsyncpa %s454, 1

</llo_original>
